<compile_context>
chip_gen: v5e
topology: v5e:2x2
jax: 0.10.0
libtpu: 0.0.40
codegen_flags: <defaults>
</compile_context>

<pallas_src>
import functools
import math

import jax
import jax.numpy as jnp
from jax import lax
from jax.experimental import pallas as pl
from jax.experimental.pallas import tpu as pltpu


# ---------------------------------------------------------------------------
# Parameter ("buffer") construction — same math as the PyTorch module.
# ---------------------------------------------------------------------------
def make_pe_table(max_length, d_model, dtype=jnp.float32):
    position = jnp.arange(max_length, dtype=jnp.float32)[:, None]            # (L, 1)
    div_term = jnp.exp(
        jnp.arange(0, d_model, 2, dtype=jnp.float32) * (-math.log(10000.0) / d_model)
    )                                                                         # (D/2,)
    pe = jnp.zeros((max_length, d_model), dtype=jnp.float32)
    pe = pe.at[:, 0::2].set(jnp.sin(position * div_term))
    pe = pe.at[:, 1::2].set(jnp.cos(position * div_term))
    return pe.astype(dtype)                                                   # (L, D)


# ---------------------------------------------------------------------------
# In-kernel helpers
# ---------------------------------------------------------------------------
def _lane_tile(t, n):
    """Repeat t n times along the last (lane) axis: [t | t | ... | t].

    Built from O(log n) minor-dim concatenations (well-supported in Mosaic).
    Since the result is periodic with period t.shape[-1], the concat order of
    whole-period pieces does not matter.
    """
    if n == 1:
        return t
    pieces, cur, remaining = [], t, n
    while remaining:
        if remaining & 1:
            pieces.append(cur)
        remaining >>= 1
        if remaining:
            cur = jnp.concatenate([cur, cur], axis=-1)
    return pieces[0] if len(pieces) == 1 else jnp.concatenate(pieces, axis=-1)


def _hash_lowbias32(h):
    """Stateless 32-bit mix (lowbias32). Plain uint32 VPU ops; portable."""
    h = h ^ (h >> jnp.uint32(16))
    h = h * jnp.uint32(0x7FEB352D)
    h = h ^ (h >> jnp.uint32(15))
    h = h * jnp.uint32(0x846CA68B)
    h = h ^ (h >> jnp.uint32(16))
    return h


# ---------------------------------------------------------------------------
# Kernels (x/out blocks are (TS, B*D); pe blocks are (TS, D))
# ---------------------------------------------------------------------------
def _pos_emb_eval_kernel(x_ref, pe_ref, o_ref):
    n_rep = x_ref.shape[-1] // pe_ref.shape[-1]          # == B (static)
    o_ref[...] = (x_ref[...] + _lane_tile(pe_ref[...], n_rep)).astype(o_ref.dtype)


def _pos_emb_train_kernel(p_drop, seed_ref, x_ref, pe_ref, o_ref):
    n_rep = x_ref.shape[-1] // pe_ref.shape[-1]          # == B (static)
    y = x_ref[...] + _lane_tile(pe_ref[...], n_rep)

    # ---- stateless dropout mask, keyed on (seed, global element index) ----
    rows_per_block, n_cols = x_ref.shape
    row0 = (pl.program_id(0) * rows_per_block).astype(jnp.uint32)
    rows = lax.broadcasted_iota(jnp.int32, y.shape, 0).astype(jnp.uint32) + row0
    cols = lax.broadcasted_iota(jnp.int32, y.shape, 1).astype(jnp.uint32)
    gidx = rows * jnp.uint32(n_cols) + cols              # unique per element
    seed_u = seed_ref[0].astype(jnp.uint32)
    h = gidx * jnp.uint32(0x9E3779B1) + seed_u * jnp.uint32(0x85EBCA77)
    bits31 = (_hash_lowbias32(h) >> jnp.uint32(1)).astype(jnp.int32)   # [0, 2^31)

    thresh = jnp.int32(int(p_drop * 2147483648.0))       # drop iff bits31 < thresh
    keep = bits31 >= thresh                              # P(keep) = 1 - p
    scale = jnp.asarray(1.0 / (1.0 - p_drop), dtype=y.dtype)
    o_ref[...] = jnp.where(keep, y * scale, jnp.zeros_like(y)).astype(o_ref.dtype)


# ---------------------------------------------------------------------------
# Module wrapper
# ---------------------------------------------------------------------------
class PosEmbedding:
    def __init__(self, d_model, dropout=0.1, max_length=500, dtype=jnp.float32):
        self.d_model = d_model
        self.p = float(dropout)
        self.max_length = max_length
        self.pe = make_pe_table(max_length, d_model, dtype)   # (max_length, D), pre-cast

    def __call__(self, x, *, training=False, seed=0):
        S, B, D = x.shape
        assert D == self.d_model and S <= self.max_length
        BD = B * D

        # Free contiguous view: seq on sublanes, B*D on lanes.
        x2 = x.reshape(S, BD)

        # ---- row-tile size: largest ~2 MiB tile (v5e-safe), sublane-aligned.
        itemsize = jnp.dtype(x.dtype).itemsize
        row_bytes = BD * itemsize
        align = max(8, 32 // itemsize)                 # 8 (f32) / 16 (bf16) / 32 (int8)
        target_rows = max(1, (2 * 1024 * 1024) // max(1, row_bytes))
        if target_rows >= S:
            ts = S                                     # single row-block (full-dim blocks always legal)
        else:
            ts = min(max(align, (target_rows // align) * align), S)
        grid = (pl.cdiv(S, ts),)

        # pe: pass the full pre-cast table when the tile is 8-row aligned (the
        # pipeline only DMAs rows [0, ceil(S/ts)*ts)); tiny slice fallback keeps
        # the block layout-legal when odd S is handled as a single full block.
        pe_in = self.pe if ts % 8 == 0 else self.pe[:S]

        out_bytes = S * BD * itemsize
        cost = pl.CostEstimate(
            flops=2 * S * BD,
            transcendentals=0,
            bytes_accessed=2 * out_bytes + S * D * self.pe.dtype.itemsize,
        )
        cparams = pltpu.CompilerParams(dimension_semantics=("parallel",))

        if (not training) or self.p == 0.0:
            out2 = pl.pallas_call(
                _pos_emb_eval_kernel,
                out_shape=jax.ShapeDtypeStruct((S, BD), x.dtype),
                grid_spec=pltpu.PrefetchScalarGridSpec(
                    num_scalar_prefetch=0,
                    grid=grid,
                    in_specs=[
                        pl.BlockSpec((ts, BD), lambda i: (i, 0)),
                        pl.BlockSpec((ts, D), lambda i: (i, 0)),
                    ],
                    out_specs=pl.BlockSpec((ts, BD), lambda i: (i, 0)),
                ),
                compiler_params=cparams,
                cost_estimate=cost,
            )(x2, pe_in)
            return out2.reshape(S, B, D)

        if self.p >= 1.0:                              # torch dropout(p=1) zeroes everything
            return jnp.zeros_like(x)

        seed_arr = jnp.asarray([seed], dtype=jnp.int32)
        out2 = pl.pallas_call(
            functools.partial(_pos_emb_train_kernel, self.p),
            out_shape=jax.ShapeDtypeStruct((S, BD), x.dtype),
            grid_spec=pltpu.PrefetchScalarGridSpec(
                num_scalar_prefetch=1,                 # seed lands in SMEM, passed first
                grid=grid,
                in_specs=[
                    pl.BlockSpec((ts, BD), lambda i, s: (i, 0)),
                    pl.BlockSpec((ts, D), lambda i, s: (i, 0)),
                ],
                out_specs=pl.BlockSpec((ts, BD), lambda i, s: (i, 0)),
            ),
            compiler_params=cparams,
            cost_estimate=cost,
        )(seed_arr, x2, pe_in)
        return out2.reshape(S, B, D)


# ---------------------------------------------------------------------------
# Test
# ---------------------------------------------------------------------------
if __name__ == "__main__":
    S, B, D = 8, 2, 32
    key = jax.random.PRNGKey(0)
    x = jax.random.normal(key, (S, B, D), dtype=jnp.float32)

    mod = PosEmbedding(d_model=D, dropout=0.1, max_length=500)

    # Eval mode (dropout is identity): must match x + pe (broadcast over batch).
    out_eval = jax.block_until_ready(mod(x, training=False))
    ref = x + mod.pe[:S][:, None, :]
    assert out_eval.shape == (S, B, D)
    assert jnp.allclose(out_eval, ref, atol=1e-6, rtol=1e-6), "eval-mode mismatch"

    # Train mode: every element is either 0 (dropped) or (x+pe)/(1-p) (kept).
    out_train = jax.block_until_ready(mod(x, training=True, seed=1234))
    scaled = ref / (1.0 - mod.p)
    is_dropped = jnp.isclose(out_train, 0.0, atol=1e-6)
    is_kept = jnp.isclose(out_train, scaled, atol=1e-5, rtol=1e-5)
    assert out_train.shape == (S, B, D)
    assert bool(jnp.all(is_dropped | is_kept)), "train-mode dropout structure mismatch"
    n_drop = int(jnp.sum(out_train == 0.0))
    assert 0 < n_drop < S * B * D, "dropout mask degenerate"

    # Same seed must reproduce the same mask.
    out_train2 = jax.block_until_ready(mod(x, training=True, seed=1234))
    assert bool(jnp.all(out_train == out_train2)), "train-mode not deterministic"

    print("KERNEL_OK")
</pallas_src>

<mosaic_0001>
module attributes {stable_mosaic.version = 11 : i64} {
  func.func @_pos_emb_eval_kernel(%arg0: i32, %arg1: memref<8x64xf32, #tpu.memory_space<vmem>>, %arg2: memref<8x32xf32, #tpu.memory_space<vmem>>, %arg3: memref<8x64xf32, #tpu.memory_space<vmem>>) attributes {dimension_semantics = [#tpu.dimension_semantics<parallel>], iteration_bounds = array<i64: 1>, scalar_prefetch = 0 : i64, scratch_operands = 0 : i64, tpu.core_type = #tpu.core_type<tc>, window_params = [{transform_indices = @transform_0, window_bounds = array<i64: 8, 64>}, {transform_indices = @transform_1, window_bounds = array<i64: 8, 32>}, {transform_indices = @transform_2, window_bounds = array<i64: 8, 64>}]} {
    %c0 = arith.constant 0 : index
    %c0_0 = arith.constant 0 : index
    %0 = vector.load %arg1[%c0, %c0_0] : memref<8x64xf32, #tpu.memory_space<vmem>>, vector<8x64xf32>
    %c0_1 = arith.constant 0 : index
    %c0_2 = arith.constant 0 : index
    %1 = vector.load %arg2[%c0_1, %c0_2] : memref<8x32xf32, #tpu.memory_space<vmem>>, vector<8x32xf32>
    %2 = tpu.concatenate %1, %1 in 1 : vector<8x32xf32>, vector<8x32xf32> -> vector<8x64xf32>
    %3 = arith.addf %0, %2 : vector<8x64xf32>
    %c0_3 = arith.constant 0 : index
    %c0_4 = arith.constant 0 : index
    %4 = vector.load %arg3[%c0_3, %c0_4] : memref<8x64xf32, #tpu.memory_space<vmem>>, vector<8x64xf32>
    tpu.vector_store %arg3[%c0_3, %c0_4], %3 {strides = array<i32>} : memref<8x64xf32, #tpu.memory_space<vmem>>, vector<8x64xf32>,
    return
  }
  func.func @transform_0(%arg0: i32) -> (i32, i32) {
    %c0_i32 = arith.constant 0 : i32
    %c0_i32_0 = arith.constant 0 : i32
    return %arg0, %c0_i32 : i32, i32
  }
  func.func @transform_1(%arg0: i32) -> (i32, i32) {
    %c0_i32 = arith.constant 0 : i32
    %c0_i32_0 = arith.constant 0 : i32
    return %arg0, %c0_i32 : i32, i32
  }
  func.func @transform_2(%arg0: i32) -> (i32, i32) {
    %c0_i32 = arith.constant 0 : i32
    %c0_i32_0 = arith.constant 0 : i32
    return %arg0, %c0_i32 : i32, i32
  }
}

</mosaic_0001>

<llo_original>
// kernel: tpu_custom_call.1
$region0: #{tpu_custom_call.1}
  #allocation0 [shape = 'u32[]', space=smem, size = 0x4, offset = 0x4, fixed_abs, tag = 'smem constant byte address 0x4 - core index']
  #allocation1 [shape = 'u32[72,128]{1,0:T(1,128)}', space=vmem, size = 0x9000, scoped, tag = 'internal scratch']
  %s0 = inlined_call_operand.vmem [shape: f32[8,64], index: 0, kind: input, shape index: {}]
  %s1 = inlined_call_operand.vmem [shape: f32[500,32], index: 1, kind: input, shape index: {}]
  %s2 = inlined_call_operand.hbm [shape: f32[8,64], index: 2, kind: output, shape index: {}]
  %s3 = sld [smem:[#allocation0]]
  $region18: #{tpu_custom_call.1} parent=0
    _
  %s5 = ssub.s32 1, %s3
  %s6 = scalar_select 0, %s5, %s3
  $region1: #{tpu_custom_call.1} parent=0
    #allocation2 [shape = 'u8[4096]{0}', space=vmem, size = 0x1000, scoped, tag = 'output window, operand 0, single buffered']
    #allocation3 [shape = 's32[1]{0}', space=sflag, size = 0x4, scoped, tag = 'scoped memory for tpu_custom_call.1']
    %7 = vsyncpa [#allocation3], 0
    // Predicated region
    $region2: #{tpu_custom_call.1} parent=1 // pred_check
      _
    $region3: #{tpu_custom_call.1} parent=1 // pred_check_branch
      %9 = sbr.rel (0) target = $region5
    $region4: #{tpu_custom_call.1} parent=1 // pred_region
      _
    $region5: #{tpu_custom_call.1} parent=1 // pred_fallthru
      _
    // Predicated region
    $region6: #{tpu_custom_call.1} parent=1 // pred_check
      _
    $region7: #{tpu_custom_call.1} parent=1 // pred_check_branch
      %11 = sbr.rel (0) target = $region9
    $region8: #{tpu_custom_call.1} parent=1 // pred_region
      _
    $region9: #{tpu_custom_call.1} parent=1 // pred_fallthru
      _
    %v12 = vld [vmem:[%s0] sm:$0xff]
    %v13 = vld [vmem:[%s1] sm:$0xff]
    %15 = vrot.lane.b32.xlu0 %v13, 32
    %v16 = vpop.permute.xlu0 %15
    %vm18 = vcmask 261120
    %v19 = vsel %vm18, %v13, %v16
    %v20 = vadd.f32 %v12, %v19
    %vm21 = vcmask 523264
    %22 = vst.msk [vmem:[#allocation2] sm:$0xff] %vm21, %v20
    // Predicated region
    $region10: #{tpu_custom_call.1} parent=1 // pred_check
      _
    $region11: #{tpu_custom_call.1} parent=1 // pred_check_branch
      %24 = sbr.rel (0) target = $region13
    $region12: #{tpu_custom_call.1} parent=1 // pred_region
      %26 = vsyncadd [#allocation3], 0
      %s28 = sshll.u32 [#allocation2], 4
      %s29 = int_to_ptr.vmem [resolvable:$true] %s28
      %s30 = sshll.u32 %s2, 4
      %s31 = int_to_ptr.hbm [resolvable:$true] %s30
      %33 = dma.vmem_to_hbm [thread:$0]  %s29, 128, %s31, [#allocation3]
    $region13: #{tpu_custom_call.1} parent=1 // pred_fallthru
      _
    // Predicated region
    $region14: #{tpu_custom_call.1} parent=1 // pred_check
      _
    $region15: #{tpu_custom_call.1} parent=1 // pred_check_branch
      %35 = sbr.rel (0) target = $region17
    $region16: #{tpu_custom_call.1} parent=1 // pred_region
      %37 = dma.done [#allocation3], 128
    $region17: #{tpu_custom_call.1} parent=1 // pred_fallthru
      _
    %38 = vsyncpa [#allocation3], 1

</llo_original>
